<compile_context>
chip_gen: v7x
topology: tpu7x:2x2x1
jax: 0.10.0
libtpu: 0.0.40
codegen_flags: <defaults>
</compile_context>

<pallas_src>
import jax
import jax.numpy as jnp
from jax.experimental import pallas as pl
from jax.experimental.pallas import tpu as pltpu


LANE = 128


def _round_up(x, m):
    return (x + m - 1) // m * m


# ----------------------------- Pallas kernel -----------------------------

def _make_kernel(n_cat, n_cont, cont_off, in_p):
    """Kernel closure over the static layer-1 fusion layout."""

    def kernel(xc_ref, cat_ref,
               w1_ref, b1_ref, w2_ref, b2_ref, w3_ref, b3_ref,
               w4_ref, b4_ref, o_ref):
        tb = xc_ref.shape[0]

        # ---- Fused embedding lookup + concat: build the layer-1 input in VMEM.
        # A multi-hot over the stacked (pre-offset) vocabularies selects the
        # rows of the fused W1 that hold  emb_table_i @ W1[rows_i]; the raw
        # continuous features are placed at lanes [cont_off, cont_off+n_cont).
        lane = jax.lax.broadcasted_iota(jnp.int32, (tb, in_p), 1)
        cats = cat_ref[...]                          # (tb, n_cat) int32, offsets pre-added
        hot = lane == cats[:, 0:1]
        for j in range(1, n_cat):
            hot = hot | (lane == cats[:, j:j + 1])
        x = hot.astype(jnp.float32)
        xc = xc_ref[...]                             # (tb, cont_p) f32
        for k in range(n_cont):
            x = jnp.where(lane == cont_off + k, xc[:, k:k + 1], x)
        x = x.astype(jnp.bfloat16)
        # TODO(synk): nn.Dropout is identity in eval mode; training-mode dropout
        # (and training-mode BatchNorm statistics) are not implemented.

        # input_layer + relu  (fold makes this exactly concat([ecat, xconts]) @ W1 + b1)
        h = jnp.dot(x, w1_ref[...], preferred_element_type=jnp.float32) + b1_ref[...]
        h = jnp.maximum(h, 0.0)

        # h_layer1 + relu
        h = jnp.dot(h.astype(jnp.bfloat16), w2_ref[...],
                    preferred_element_type=jnp.float32) + b2_ref[...]
        h = jnp.maximum(h, 0.0)

        # bat_norm2 folded into h_layer2; h_layer2 + relu
        h = jnp.dot(h.astype(jnp.bfloat16), w3_ref[...],
                    preferred_element_type=jnp.float32) + b3_ref[...]
        h = jnp.maximum(h, 0.0)

        # bat_norm3 folded into `out`; the 1-wide output layer runs on the VPU
        # (broadcast multiply) + XLU (lane reduce) instead of the MXU, and is
        # stored as a narrow (tb, 1) f32 block (4 B/row of HBM writeback).
        o_ref[...] = jnp.sum(h * w4_ref[...], axis=-1, keepdims=True) + b4_ref[0]

    return kernel


def run_mlp(xc_pad, cat_pad, params, meta, tb, num_tiles):
    """xc_pad: (Bp, cont_p) f32, cat_pad: (Bp, n_cat) int32, Bp == num_tiles*tb."""
    Bp, cont_p = xc_pad.shape
    n_cat = cat_pad.shape[1]
    w1, b1, w2, b2, w3, b3, w4row, b4 = params
    kernel = _make_kernel(n_cat=n_cat, n_cont=meta["x_con"],
                          cont_off=meta["cont_off"], in_p=meta["in_p"])

    def resident(a):
        # Constant index_map -> the pipeliner skips re-copying these blocks
        # across batch tiles (VMEM-resident weights/biases).
        return pl.BlockSpec(a.shape, lambda i: (0, 0))

    return pl.pallas_call(
        kernel,
        out_shape=jax.ShapeDtypeStruct((Bp, 1), jnp.float32),
        grid_spec=pltpu.PrefetchScalarGridSpec(
            num_scalar_prefetch=0,
            grid=(num_tiles,),
            in_specs=[
                pl.BlockSpec((tb, cont_p), lambda i: (i, 0)),   # continuous features
                pl.BlockSpec((tb, n_cat), lambda i: (i, 0)),    # categorical ids (+offsets)
                resident(w1), resident(b1),
                resident(w2), resident(b2),
                resident(w3), resident(b3),
                resident(w4row),
                pl.BlockSpec(memory_space=pltpu.MemorySpace.SMEM),  # b4 scalar
            ],
            out_specs=pl.BlockSpec((tb, 1), lambda i: (i, 0)),
        ),
        compiler_params=pltpu.CompilerParams(
            # Batch axis sharded over TensorCores (2 TCs on v7x); the wrapper
            # guarantees >= 2 grid tiles so neither core idles.
            dimension_semantics=("parallel",),
            # Explicit budget: ~a few MiB used at tb=1024; 32 MiB is safe on
            # v5e/v6e (128 MiB VMEM) and within v7x's 64 MiB physical VMEM.
            vmem_limit_bytes=32 << 20,
        ),
    )(xc_pad, cat_pad, w1, b1, w2, b2, w3, b3, w4row, b4)


# ----------------------------- Parameter setup -----------------------------

def init_raw_params(key, emb_szs, x_con, h1, h2, h3):
    """Deterministic synthetic parameters matching the PyTorch module shapes."""
    keys = jax.random.split(key, 8)
    k_iter = iter(keys)

    emb_tables = [
        0.1 * jax.random.normal(next(k_iter), (nf, ne), dtype=jnp.float32)
        for nf, ne in emb_szs
    ]
    num_cat_embed = sum(ne for _, ne in emb_szs)
    in_dim = num_cat_embed + x_con

    def linear(k, fan_in, fan_out):
        kw, kb = jax.random.split(k)
        w = 0.1 * jax.random.normal(kw, (fan_in, fan_out), dtype=jnp.float32)
        b = 0.1 * jax.random.normal(kb, (1, fan_out), dtype=jnp.float32)
        return w, b

    w1, b1 = linear(next(k_iter), in_dim, h1)
    w2, b2 = linear(next(k_iter), h1, h2)
    w3, b3 = linear(next(k_iter), h2, h3)
    w4, b4 = linear(next(k_iter), h3, 1)

    # BatchNorm1d eval-mode params (PyTorch defaults: gamma=1, beta=0,
    # running_mean=0, running_var=1, eps=1e-5) -> per-feature scale/shift.
    eps = 1e-5

    def bn_fold(dim):
        gamma = jnp.ones((1, dim), jnp.float32)
        beta = jnp.zeros((1, dim), jnp.float32)
        mean = jnp.zeros((1, dim), jnp.float32)
        var = jnp.ones((1, dim), jnp.float32)
        scale = gamma / jnp.sqrt(var + eps)
        shift = beta - mean * scale
        return scale, shift

    s2, t2 = bn_fold(h2)
    s3, t3 = bn_fold(h3)

    raw = dict(w1=w1, b1=b1, w2=w2, b2=b2, s2=s2, t2=t2,
               w3=w3, b3=b3, s3=s3, t3=t3, w4=w4, b4=b4)
    return emb_tables, raw, in_dim


def prepare_params(raw, emb_tables, emb_szs, x_con):
    """Fold eval-mode BNs into adjacent linears, fold embedding tables through
    their W1 row-slices, zero-pad feature dims to 128-lane multiples, cast
    matmul weights to bf16 (biases / w4 row stay f32)."""
    w1, b1 = raw["w1"], raw["b1"]
    w2, b2 = raw["w2"], raw["b2"]
    w3, b3 = raw["w3"], raw["b3"]
    w4, b4 = raw["w4"], raw["b4"]
    s2, t2 = raw["s2"], raw["t2"]
    s3, t3 = raw["s3"], raw["t3"]

    emb_dims = [d for _, d in emb_szs]
    vocabs = [v for v, _ in emb_szs]
    n_cat = len(emb_szs)
    num_cat_embed = sum(emb_dims)
    in_dim, h1 = w1.shape
    h2 = w2.shape[1]
    h3 = w3.shape[1]
    assert in_dim == num_cat_embed + x_con

    h1_p = _round_up(h1, LANE)
    h2_p = _round_up(h2, LANE)
    h3_p = _round_up(h3, LANE)
    cont_p = _round_up(max(x_con, 1), 8)

    # Fused layer-1 row layout: continuous rows of W1 first, then each
    # embedding table folded through its W1 row-slice.
    cont_off = 0
    off = _round_up(x_con, 8)
    cat_offs = []
    for v in vocabs:
        cat_offs.append(off)
        off += v
    in_p = max(LANE, _round_up(off, LANE))

    w1_f = jnp.zeros((in_p, h1), jnp.float32)
    w1_f = w1_f.at[cont_off:cont_off + x_con, :].set(
        w1[num_cat_embed:num_cat_embed + x_con, :])
    row = 0
    for i, d in enumerate(emb_dims):
        folded = emb_tables[i] @ w1[row:row + d, :]          # (vocab_i, h1)
        w1_f = w1_f.at[cat_offs[i]:cat_offs[i] + vocabs[i], :].set(folded)
        row += d

    # Eval-mode BN2 / BN3 folded into the following linears:
    # (h*s2 + t2) @ w3 + b3 == h @ (s2^T * w3) + (t2 @ w3 + b3), same for BN3/out.
    w3f = w3 * s2.reshape(-1, 1)
    b3f = b3 + t2 @ w3
    w4f = w4 * s3.reshape(-1, 1)          # (h3, 1)
    b4f = b4 + t3 @ w4                    # (1, 1)

    def pad2(a, rows, cols):
        return jnp.pad(a, ((0, rows - a.shape[0]), (0, cols - a.shape[1])))

    bf = jnp.bfloat16
    params = (
        pad2(w1_f, in_p, h1_p).astype(bf), pad2(b1, 1, h1_p),
        pad2(w2, h1_p, h2_p).astype(bf),   pad2(b2, 1, h2_p),
        pad2(w3f, h2_p, h3_p).astype(bf),  pad2(b3f, 1, h3_p),
        pad2(w4f.T, 1, h3_p),              # (1, h3_p) f32, VPU path
        b4f.reshape((1,)).astype(jnp.float32),
    )
    meta = dict(in_p=in_p, cont_off=cont_off, cont_p=cont_p,
                cat_offs=cat_offs, x_con=x_con, n_cat=n_cat)
    return params, meta


# ----------------------------- Forward pass -----------------------------

def model_forward(xconts, xcats, params, meta, tb=1024):
    """Eval-mode forward.  NOTE: bat_norm1(xconts) in the PyTorch forward is
    dead code (its result is never used), so it is omitted."""
    B = xconts.shape[0]
    x_con = meta["x_con"]
    cont_p = meta["cont_p"]
    offs = jnp.asarray(meta["cat_offs"], jnp.int32)

    # Batch tiling: at least 2 tiles so the "parallel" grid axis spans both
    # TensorCores on v7x; large tiles (default 1024 rows) amortize per-step
    # grid overhead.
    tb_eff = min(tb, _round_up(max((B + 1) // 2, 1), 8))
    num_tiles = max(2, -(-B // tb_eff))
    Bp = num_tiles * tb_eff

    xc = jnp.pad(xconts.astype(jnp.float32),
                 ((0, Bp - B), (0, cont_p - x_con)))
    cats = jnp.pad(xcats.astype(jnp.int32) + offs[None, :],
                   ((0, Bp - B), (0, 0)))

    out = run_mlp(xc, cats, params, meta, tb_eff, num_tiles)   # (Bp, 1) f32
    return out[:B]


# ----------------------------- References -----------------------------

def reference_fused(xconts, xcats, params, meta):
    """Plain-jnp mirror of the kernel math (same folded/padded bf16 params)."""
    w1, b1, w2, b2, w3, b3, w4row, b4 = params
    B = xconts.shape[0]
    x = jnp.zeros((B, meta["in_p"]), jnp.float32)
    x = x.at[:, meta["cont_off"]:meta["cont_off"] + meta["x_con"]].set(xconts)
    rows = jnp.arange(B)
    for j, off in enumerate(meta["cat_offs"]):
        x = x.at[rows, off + xcats[:, j]].set(1.0)

    def q(a):  # bf16 quantize, compute in f32
        return a.astype(jnp.bfloat16).astype(jnp.float32)

    h = jnp.maximum(q(x) @ w1.astype(jnp.float32) + b1, 0.0)
    h = jnp.maximum(q(h) @ w2.astype(jnp.float32) + b2, 0.0)
    h = jnp.maximum(q(h) @ w3.astype(jnp.float32) + b3, 0.0)
    return jnp.sum(h * w4row, axis=-1, keepdims=True) + b4[0]


# ----------------------------- Main -----------------------------

if __name__ == "__main__":
    # 3 categorical features with (vocab, emb_dim) = (10,4), (7,3), (5,2),
    # 5 continuous features, hidden sizes 100/200/100, batch = 8.
    emb_szs = [(10, 4), (7, 3), (5, 2)]
    x_con, h1, h2, h3 = 5, 100, 200, 100
    B = 8

    key = jax.random.PRNGKey(0)
    k_param, k_cont, k_cat = jax.random.split(key, 3)

    emb_tables, raw, in_dim = init_raw_params(k_param, emb_szs, x_con, h1, h2, h3)
    params, meta = prepare_params(raw, emb_tables, emb_szs, x_con)

    xconts = jax.random.normal(k_cont, (B, x_con), dtype=jnp.float32)
    cat_keys = jax.random.split(k_cat, len(emb_szs))
    xcats = jnp.stack(
        [jax.random.randint(cat_keys[i], (B,), 0, emb_szs[i][0])
         for i in range(len(emb_szs))], axis=1).astype(jnp.int32)

    out = model_forward(xconts, xcats, params, meta)
    out = jax.block_until_ready(out)
    assert out.shape == (B, 1), out.shape

    # ---- Reference 1: mirrors the kernel's bf16/folded math (tight check) ----
    ref_bf16 = reference_fused(xconts, xcats, params, meta)
    assert jnp.allclose(out, ref_bf16, atol=2e-3, rtol=2e-3), "mismatch vs bf16 reference"

    # ---- Reference 2: pure-f32 PyTorch-eval semantics (loose sanity check) ----
    ecat = jnp.concatenate(
        [emb_tables[i][xcats[:, i]] for i in range(len(emb_tables))], axis=1)
    xfull = jnp.concatenate([ecat, xconts], axis=1)
    h = jnp.maximum(xfull @ raw["w1"] + raw["b1"], 0.0)
    h = jnp.maximum(h @ raw["w2"] + raw["b2"], 0.0)
    h = h * raw["s2"] + raw["t2"]
    h = jnp.maximum(h @ raw["w3"] + raw["b3"], 0.0)
    h = h * raw["s3"] + raw["t3"]
    ref_f32 = h @ raw["w4"] + raw["b4"]
    assert jnp.allclose(out, ref_f32, atol=5e-2, rtol=5e-2), "mismatch vs f32 reference"

    print("KERNEL_OK")
</pallas_src>

<mosaic_0001>
module attributes {stable_mosaic.version = 11 : i64} {
  func.func @kernel(%arg0: i32, %arg1: memref<8x8xf32, #tpu.memory_space<vmem>>, %arg2: memref<8x3xi32, #tpu.memory_space<vmem>>, %arg3: memref<128x128xbf16, #tpu.memory_space<vmem>>, %arg4: memref<1x128xf32, #tpu.memory_space<vmem>>, %arg5: memref<128x256xbf16, #tpu.memory_space<vmem>>, %arg6: memref<1x256xf32, #tpu.memory_space<vmem>>, %arg7: memref<256x128xbf16, #tpu.memory_space<vmem>>, %arg8: memref<1x128xf32, #tpu.memory_space<vmem>>, %arg9: memref<1x128xf32, #tpu.memory_space<vmem>>, %arg10: memref<1xf32, #tpu.memory_space<smem>>, %arg11: memref<8x1xf32, #tpu.memory_space<vmem>>) attributes {dimension_semantics = [#tpu.dimension_semantics<parallel>], iteration_bounds = array<i64: 2>, scalar_prefetch = 0 : i64, scratch_operands = 0 : i64, tpu.core_type = #tpu.core_type<tc>, window_params = [{transform_indices = @transform_0, window_bounds = array<i64: 8, 8>}, {transform_indices = @transform_1, window_bounds = array<i64: 8, 3>}, {pipeline_mode = #tpu.pipeline_mode<synchronous>, transform_indices = @transform_2, window_bounds = array<i64: 128, 128>}, {pipeline_mode = #tpu.pipeline_mode<synchronous>, transform_indices = @transform_3, window_bounds = array<i64: 1, 128>}, {pipeline_mode = #tpu.pipeline_mode<synchronous>, transform_indices = @transform_4, window_bounds = array<i64: 128, 256>}, {pipeline_mode = #tpu.pipeline_mode<synchronous>, transform_indices = @transform_5, window_bounds = array<i64: 1, 256>}, {pipeline_mode = #tpu.pipeline_mode<synchronous>, transform_indices = @transform_6, window_bounds = array<i64: 256, 128>}, {pipeline_mode = #tpu.pipeline_mode<synchronous>, transform_indices = @transform_7, window_bounds = array<i64: 1, 128>}, {pipeline_mode = #tpu.pipeline_mode<synchronous>, transform_indices = @transform_8, window_bounds = array<i64: 1, 128>}, {transform_indices = @transform_9, window_bounds = array<i64: 1>}, {transform_indices = @transform_10, window_bounds = array<i64: 8, 1>}]} {
    %0 = tpu.iota {dimensions = array<i32: 1>} : vector<8x128xi32>
    %c0 = arith.constant 0 : index
    %c0_0 = arith.constant 0 : index
    %1 = vector.load %arg2[%c0, %c0_0] : memref<8x3xi32, #tpu.memory_space<vmem>>, vector<8x3xi32>
    %2 = vector.extract_strided_slice %1 {offsets = [0, 0], sizes = [8, 1], strides = [1, 1]} : vector<8x3xi32> to vector<8x1xi32>
    %3 = vector.broadcast %2 : vector<8x1xi32> to vector<8x128xi32>
    %4 = arith.cmpi eq, %0, %3 : vector<8x128xi32>
    %5 = vector.extract_strided_slice %1 {offsets = [0, 1], sizes = [8, 1], strides = [1, 1]} : vector<8x3xi32> to vector<8x1xi32>
    %6 = vector.broadcast %5 : vector<8x1xi32> to vector<8x128xi32>
    %7 = arith.cmpi eq, %0, %6 : vector<8x128xi32>
    %8 = arith.ori %4, %7 : vector<8x128xi1>
    %9 = vector.extract_strided_slice %1 {offsets = [0, 2], sizes = [8, 1], strides = [1, 1]} : vector<8x3xi32> to vector<8x1xi32>
    %10 = vector.broadcast %9 : vector<8x1xi32> to vector<8x128xi32>
    %11 = arith.cmpi eq, %0, %10 : vector<8x128xi32>
    %12 = arith.ori %8, %11 : vector<8x128xi1>
    %13 = arith.extui %12 : vector<8x128xi1> to vector<8x128xi32>
    %14 = arith.sitofp %13 : vector<8x128xi32> to vector<8x128xf32>
    %c0_1 = arith.constant 0 : index
    %c0_2 = arith.constant 0 : index
    %15 = vector.load %arg1[%c0_1, %c0_2] : memref<8x8xf32, #tpu.memory_space<vmem>>, vector<8x8xf32>
    %c0_i32 = arith.constant 0 : i32
    %16 = vector.broadcast %c0_i32 : i32 to vector<8x128xi32>
    %17 = arith.cmpi eq, %0, %16 : vector<8x128xi32>
    %18 = vector.extract_strided_slice %15 {offsets = [0, 0], sizes = [8, 1], strides = [1, 1]} : vector<8x8xf32> to vector<8x1xf32>
    %19 = vector.shape_cast %18 : vector<8x1xf32> to vector<8x1xf32>
    %20 = vector.broadcast %19 : vector<8x1xf32> to vector<8x128xf32>
    %21 = arith.select %17, %20, %14 : vector<8x128xi1>, vector<8x128xf32>
    %c1_i32 = arith.constant 1 : i32
    %22 = vector.broadcast %c1_i32 : i32 to vector<8x128xi32>
    %23 = arith.cmpi eq, %0, %22 : vector<8x128xi32>
    %24 = vector.extract_strided_slice %15 {offsets = [0, 1], sizes = [8, 1], strides = [1, 1]} : vector<8x8xf32> to vector<8x1xf32>
    %25 = vector.shape_cast %24 : vector<8x1xf32> to vector<8x1xf32>
    %26 = vector.broadcast %25 : vector<8x1xf32> to vector<8x128xf32>
    %27 = arith.select %23, %26, %21 : vector<8x128xi1>, vector<8x128xf32>
    %c2_i32 = arith.constant 2 : i32
    %28 = vector.broadcast %c2_i32 : i32 to vector<8x128xi32>
    %29 = arith.cmpi eq, %0, %28 : vector<8x128xi32>
    %30 = vector.extract_strided_slice %15 {offsets = [0, 2], sizes = [8, 1], strides = [1, 1]} : vector<8x8xf32> to vector<8x1xf32>
    %31 = vector.shape_cast %30 : vector<8x1xf32> to vector<8x1xf32>
    %32 = vector.broadcast %31 : vector<8x1xf32> to vector<8x128xf32>
    %33 = arith.select %29, %32, %27 : vector<8x128xi1>, vector<8x128xf32>
    %c3_i32 = arith.constant 3 : i32
    %34 = vector.broadcast %c3_i32 : i32 to vector<8x128xi32>
    %35 = arith.cmpi eq, %0, %34 : vector<8x128xi32>
    %36 = vector.extract_strided_slice %15 {offsets = [0, 3], sizes = [8, 1], strides = [1, 1]} : vector<8x8xf32> to vector<8x1xf32>
    %37 = vector.shape_cast %36 : vector<8x1xf32> to vector<8x1xf32>
    %38 = vector.broadcast %37 : vector<8x1xf32> to vector<8x128xf32>
    %39 = arith.select %35, %38, %33 : vector<8x128xi1>, vector<8x128xf32>
    %c4_i32 = arith.constant 4 : i32
    %40 = vector.broadcast %c4_i32 : i32 to vector<8x128xi32>
    %41 = arith.cmpi eq, %0, %40 : vector<8x128xi32>
    %42 = vector.extract_strided_slice %15 {offsets = [0, 4], sizes = [8, 1], strides = [1, 1]} : vector<8x8xf32> to vector<8x1xf32>
    %43 = vector.shape_cast %42 : vector<8x1xf32> to vector<8x1xf32>
    %44 = vector.broadcast %43 : vector<8x1xf32> to vector<8x128xf32>
    %45 = arith.select %41, %44, %39 : vector<8x128xi1>, vector<8x128xf32>
    %46 = arith.truncf %45 : vector<8x128xf32> to vector<8x128xbf16>
    %c0_3 = arith.constant 0 : index
    %c0_4 = arith.constant 0 : index
    %47 = vector.load %arg3[%c0_3, %c0_4] : memref<128x128xbf16, #tpu.memory_space<vmem>>, vector<128x128xbf16>
    %cst = arith.constant dense<0.000000e+00> : vector<8x128xf32>
    %48 = tpu.matmul %46, %47, %cst {dimension_numbers = #tpu.dot_dimension_numbers<[1], [0], [0], [1], [0, 0, 1, 1], [], []>} : vector<8x128xbf16>, vector<128x128xbf16>, vector<8x128xf32> -> vector<8x128xf32>
    %c0_5 = arith.constant 0 : index
    %c0_6 = arith.constant 0 : index
    %49 = vector.load %arg4[%c0_5, %c0_6] : memref<1x128xf32, #tpu.memory_space<vmem>>, vector<1x128xf32>
    %50 = vector.broadcast %49 : vector<1x128xf32> to vector<8x128xf32>
    %51 = arith.addf %48, %50 : vector<8x128xf32>
    %cst_7 = arith.constant 0.000000e+00 : f32
    %52 = vector.broadcast %cst_7 : f32 to vector<8x128xf32>
    %53 = arith.maximumf %51, %52 : vector<8x128xf32>
    %54 = arith.truncf %53 : vector<8x128xf32> to vector<8x128xbf16>
    %c0_8 = arith.constant 0 : index
    %c0_9 = arith.constant 0 : index
    %55 = vector.load %arg5[%c0_8, %c0_9] : memref<128x256xbf16, #tpu.memory_space<vmem>>, vector<128x256xbf16>
    %cst_10 = arith.constant dense<0.000000e+00> : vector<8x256xf32>
    %56 = tpu.matmul %54, %55, %cst_10 {dimension_numbers = #tpu.dot_dimension_numbers<[1], [0], [0], [1], [0, 0, 1, 1], [], []>} : vector<8x128xbf16>, vector<128x256xbf16>, vector<8x256xf32> -> vector<8x256xf32>
    %c0_11 = arith.constant 0 : index
    %c0_12 = arith.constant 0 : index
    %57 = vector.load %arg6[%c0_11, %c0_12] : memref<1x256xf32, #tpu.memory_space<vmem>>, vector<1x256xf32>
    %58 = vector.broadcast %57 : vector<1x256xf32> to vector<8x256xf32>
    %59 = arith.addf %56, %58 : vector<8x256xf32>
    %cst_13 = arith.constant 0.000000e+00 : f32
    %60 = vector.broadcast %cst_13 : f32 to vector<8x256xf32>
    %61 = arith.maximumf %59, %60 : vector<8x256xf32>
    %62 = arith.truncf %61 : vector<8x256xf32> to vector<8x256xbf16>
    %c0_14 = arith.constant 0 : index
    %c0_15 = arith.constant 0 : index
    %63 = vector.load %arg7[%c0_14, %c0_15] : memref<256x128xbf16, #tpu.memory_space<vmem>>, vector<256x128xbf16>
    %cst_16 = arith.constant dense<0.000000e+00> : vector<8x128xf32>
    %64 = tpu.matmul %62, %63, %cst_16 {dimension_numbers = #tpu.dot_dimension_numbers<[1], [0], [0], [1], [0, 0, 1, 1], [], []>} : vector<8x256xbf16>, vector<256x128xbf16>, vector<8x128xf32> -> vector<8x128xf32>
    %c0_17 = arith.constant 0 : index
    %c0_18 = arith.constant 0 : index
    %65 = vector.load %arg8[%c0_17, %c0_18] : memref<1x128xf32, #tpu.memory_space<vmem>>, vector<1x128xf32>
    %66 = vector.broadcast %65 : vector<1x128xf32> to vector<8x128xf32>
    %67 = arith.addf %64, %66 : vector<8x128xf32>
    %cst_19 = arith.constant 0.000000e+00 : f32
    %68 = vector.broadcast %cst_19 : f32 to vector<8x128xf32>
    %69 = arith.maximumf %67, %68 : vector<8x128xf32>
    %c0_20 = arith.constant 0 : index
    %c0_21 = arith.constant 0 : index
    %70 = vector.load %arg9[%c0_20, %c0_21] : memref<1x128xf32, #tpu.memory_space<vmem>>, vector<1x128xf32>
    %71 = vector.broadcast %70 : vector<1x128xf32> to vector<8x128xf32>
    %72 = arith.mulf %69, %71 : vector<8x128xf32>
    %cst_22 = arith.constant dense<0.000000e+00> : vector<8xf32>
    %73 = vector.multi_reduction <add>, %72, %cst_22 [1] : vector<8x128xf32> to vector<8xf32>
    %74 = vector.shape_cast %73 : vector<8xf32> to vector<8x1xf32>
    %c0_23 = arith.constant 0 : index
    %75 = memref.load %arg10[%c0_23] : memref<1xf32, #tpu.memory_space<smem>>
    %76 = vector.broadcast %75 : f32 to vector<8x1xf32>
    %77 = arith.addf %74, %76 : vector<8x1xf32>
    %c0_24 = arith.constant 0 : index
    %c0_25 = arith.constant 0 : index
    %78 = vector.load %arg11[%c0_24, %c0_25] : memref<8x1xf32, #tpu.memory_space<vmem>>, vector<8x1xf32>
    tpu.vector_store %arg11[%c0_24, %c0_25], %77 {strides = array<i32>} : memref<8x1xf32, #tpu.memory_space<vmem>>, vector<8x1xf32>,
    return
  }
  func.func @transform_0(%arg0: i32) -> (i32, i32) {
    %c0_i32 = arith.constant 0 : i32
    %c0_i32_0 = arith.constant 0 : i32
    return %arg0, %c0_i32 : i32, i32
  }
  func.func @transform_1(%arg0: i32) -> (i32, i32) {
    %c0_i32 = arith.constant 0 : i32
    %c0_i32_0 = arith.constant 0 : i32
    return %arg0, %c0_i32 : i32, i32
  }
  func.func @transform_2(%arg0: i32) -> (i32, i32) {
    %c0_i32 = arith.constant 0 : i32
    %c0_i32_0 = arith.constant 0 : i32
    %c0_i32_1 = arith.constant 0 : i32
    return %c0_i32, %c0_i32_0 : i32, i32
  }
  func.func @transform_3(%arg0: i32) -> (i32, i32) {
    %c0_i32 = arith.constant 0 : i32
    %c0_i32_0 = arith.constant 0 : i32
    %c0_i32_1 = arith.constant 0 : i32
    return %c0_i32, %c0_i32_0 : i32, i32
  }
  func.func @transform_4(%arg0: i32) -> (i32, i32) {
    %c0_i32 = arith.constant 0 : i32
    %c0_i32_0 = arith.constant 0 : i32
    %c0_i32_1 = arith.constant 0 : i32
    return %c0_i32, %c0_i32_0 : i32, i32
  }
  func.func @transform_5(%arg0: i32) -> (i32, i32) {
    %c0_i32 = arith.constant 0 : i32
    %c0_i32_0 = arith.constant 0 : i32
    %c0_i32_1 = arith.constant 0 : i32
    return %c0_i32, %c0_i32_0 : i32, i32
  }
  func.func @transform_6(%arg0: i32) -> (i32, i32) {
    %c0_i32 = arith.constant 0 : i32
    %c0_i32_0 = arith.constant 0 : i32
    %c0_i32_1 = arith.constant 0 : i32
    return %c0_i32, %c0_i32_0 : i32, i32
  }
  func.func @transform_7(%arg0: i32) -> (i32, i32) {
    %c0_i32 = arith.constant 0 : i32
    %c0_i32_0 = arith.constant 0 : i32
    %c0_i32_1 = arith.constant 0 : i32
    return %c0_i32, %c0_i32_0 : i32, i32
  }
  func.func @transform_8(%arg0: i32) -> (i32, i32) {
    %c0_i32 = arith.constant 0 : i32
    %c0_i32_0 = arith.constant 0 : i32
    %c0_i32_1 = arith.constant 0 : i32
    return %c0_i32, %c0_i32_0 : i32, i32
  }
  func.func @transform_9(%arg0: i32) -> i32 {
    %c0_i32 = arith.constant 0 : i32
    %c0_i32_0 = arith.constant 0 : i32
    return %c0_i32 : i32
  }
  func.func @transform_10(%arg0: i32) -> (i32, i32) {
    %c0_i32 = arith.constant 0 : i32
    %c0_i32_0 = arith.constant 0 : i32
    return %arg0, %c0_i32 : i32, i32
  }
}

</mosaic_0001>

<llo_original>
// kernel: tpu_custom_call.1
$region0: #{tpu_custom_call.1}
  #allocation0 [shape = 'u32[]', space=smem, size = 0x4, offset = 0x4, fixed_abs, tag = 'smem constant byte address 0x4 - core index']
  #allocation1 [shape = 'u32[144,128]{1,0:T(1,128)}', space=vmem, size = 0x12000, scoped, tag = 'internal scratch']
  #allocation2 [shape = 'f32[1]{0:T(128)S(6)}', space=smem, size = 0x200, scoped, tag = 'scoped memory for tpu_custom_call.1']
  %s0 = inlined_call_operand.vmem [shape: f32[16,8], index: 0, kind: input, shape index: {}]
  %s1 = inlined_call_operand.vmem [shape: s32[16,3], index: 1, kind: input, shape index: {}]
  %s2 = inlined_call_operand.hbm [shape: bf16[128,128], index: 2, kind: input, shape index: {}]
  %s3 = inlined_call_operand.vmem [shape: f32[1,128], index: 3, kind: input, shape index: {}]
  %s4 = inlined_call_operand.hbm [shape: bf16[128,256], index: 4, kind: input, shape index: {}]
  %s5 = inlined_call_operand.vmem [shape: f32[1,256], index: 5, kind: input, shape index: {}]
  %s6 = inlined_call_operand.hbm [shape: bf16[256,128], index: 6, kind: input, shape index: {}]
  %s7 = inlined_call_operand.vmem [shape: f32[1,128], index: 7, kind: input, shape index: {}]
  %s8 = inlined_call_operand.vmem [shape: f32[1,128], index: 8, kind: input, shape index: {}]
  %s9 = inlined_call_operand.<no memory space> [shape: f32[1], index: 9, kind: input, shape index: {}]
  %s10 = inlined_call_operand.vmem [shape: f32[16,1], index: 10, kind: output, shape index: {}]
  %s11 = sld [smem:[#allocation0]]
  $region85: #{tpu_custom_call.1} parent=0
    _
  %s13 = ssub.s32 1, %s11
  %s14 = scalar_select 0, %s13, %s11
  %15 = sst [smem:[#allocation2]] %s9
  $region1: #{tpu_custom_call.1} parent=0
    #allocation3 [shape = 'u8[32768]{0}', space=vmem, size = 0x8000, scoped, tag = 'input window, operand 2, single buffered']
    #allocation4 [shape = 's32[2]{0}', space=sflag, size = 0x8, scoped, tag = 'scoped memory for tpu_custom_call.1']
    #allocation5 [shape = 'u8[65536]{0}', space=vmem, size = 0x10000, scoped, tag = 'input window, operand 4, single buffered']
    #allocation6 [shape = 's32[1]{0}', space=sflag, size = 0x4, scoped, tag = 'scoped memory for tpu_custom_call.1']
    #allocation7 [shape = 'u8[65536]{0}', space=vmem, size = 0x10000, scoped, tag = 'input window, operand 6, single buffered']
    %16 = vsyncpa [#allocation4], 0
    %17 = vsyncpa [#allocation6], 0
    loop: start=0, step=1, limit=4
    $region2: #{tpu_custom_call.1} parent=1 // loop_pre_header
      _
    $region3: #{tpu_custom_call.1} parent=1 // loop_header
      %s19 = sphi 0, %s23
      %p20 = scmp.ge.s32.totalorder %s19, 4
      %s29 = sphi 0, %s31
      %s32 = sphi 0, %s29
      %s33 = sphi 0, %s32
      %s49 = sphi 0, %s33
      %s55 = sphi 0, %s57
      %s58 = sphi 0, %s55
      %s59 = sphi 0, %s58
      %s75 = sphi 0, %s59
      %s79 = sphi 0, %s79
      %s81 = sphi 0, %s79
      %s82 = sphi 0, %s81
      %s96 = sphi 0, %s82
      %s100 = sphi 0, %s100
      %s102 = sphi 0, %s100
      %s103 = sphi 0, %s102
      %s117 = sphi 0, %s103
      %s121 = sphi 0, %s121
      %s123 = sphi 0, %s121
      %s124 = sphi 0, %s123
      %s138 = sphi 0, %s124
      %s142 = sphi 0, %s142
      %s144 = sphi 0, %s142
      %s145 = sphi 0, %s144
      %s159 = sphi 0, %s145
      %s163 = sphi 0, %s163
      %s165 = sphi 0, %s163
      %s166 = sphi 0, %s165
      %s180 = sphi 0, %s166
      %s184 = sphi 0, %s184
      %s186 = sphi 0, %s184
      %s187 = sphi 0, %s186
      %s201 = sphi 0, %s187
      %s205 = sphi 0, %s205
      %s207 = sphi 0, %s205
      %s208 = sphi 0, %s207
      %s222 = sphi 0, %s208
      %s226 = sphi 0, %s226
      %s228 = sphi 0, %s226
      %s229 = sphi 0, %s228
      %s243 = sphi 0, %s229
      %s249 = sphi 0, %s251
      %s252 = sphi 0, %s249
      %s253 = sphi 0, %s252
      %s269 = sphi 0, %s253
    $region4: #{tpu_custom_call.1} parent=1 // loop_header_branch
      %22 = sbr.rel (%p20) target = $region8
    $region5: #{tpu_custom_call.1} parent=1 // loop_body
      %s24 = ssub.s32 %s19, 1
      %s25 = ssub.s32 %s19, 2
      %s26 = sadd.s32 %s19, 1
      %s27 = ssub.s32 %s19, %s26
      %p28 = scmp.eq.s32.totalorder %s27, 0
      %s30 = sadd.s32 %s29, 1
      %s31 = scalar_select %p28, %s29, %s30
      %p34 = pneg %p28
      %p35 = scmp.eq.s32.totalorder %s19, 1
      %p36 = por %p34, %p35
      %p37 = scmp.ne.s32.totalorder %s29, %s32
      %p38 = scmp.eq.s32.totalorder %s19, 0
      %p39 = por %p37, %p38
      %p40 = scmp.ne.s32.totalorder %s29, %s32
      %p41 = scmp.eq.s32.totalorder %s24, 1
      %p42 = por %p40, %p41
      %p43 = scmp.ne.s32.totalorder %s32, %s33
      %p44 = scmp.eq.s32.totalorder %s24, 0
      %p45 = por %p43, %p44
      %p46 = scmp.ne.s32.totalorder %s32, %s33
      %p47 = scmp.eq.s32.totalorder %s25, 1
      %p48 = por %p46, %p47
      %p50 = scmp.ne.s32.totalorder %s33, %s49
      %p51 = scmp.eq.s32.totalorder %s25, 0
      %p52 = por %p50, %p51
      %s53 = ssub.s32 %s19, %s26
      %p54 = scmp.eq.s32.totalorder %s53, 0
      %s56 = sadd.s32 %s55, 1
      %s57 = scalar_select %p54, %s55, %s56
      %p60 = pneg %p54
      %p61 = scmp.eq.s32.totalorder %s19, 1
      %p62 = por %p60, %p61
      %p63 = scmp.ne.s32.totalorder %s55, %s58
      %p64 = scmp.eq.s32.totalorder %s19, 0
      %p65 = por %p63, %p64
      %p66 = scmp.ne.s32.totalorder %s55, %s58
      %p67 = scmp.eq.s32.totalorder %s24, 1
      %p68 = por %p66, %p67
      %p69 = scmp.ne.s32.totalorder %s58, %s59
      %p70 = scmp.eq.s32.totalorder %s24, 0
      %p71 = por %p69, %p70
      %p72 = scmp.ne.s32.totalorder %s58, %s59
      %p73 = scmp.eq.s32.totalorder %s25, 1
      %p74 = por %p72, %p73
      %p76 = scmp.ne.s32.totalorder %s59, %s75
      %p77 = scmp.eq.s32.totalorder %s25, 0
      %p78 = por %p76, %p77
      %s80 = sadd.s32 %s79, 1
      %p83 = scmp.eq.s32.totalorder %s19, 1
      %p84 = scmp.ne.s32.totalorder %s79, %s81
      %p85 = scmp.eq.s32.totalorder %s19, 0
      %p86 = por %p84, %p85
      %p87 = scmp.ne.s32.totalorder %s79, %s81
      %p88 = scmp.eq.s32.totalorder %s24, 1
      %p89 = por %p87, %p88
      %p90 = scmp.ne.s32.totalorder %s81, %s82
      %p91 = scmp.eq.s32.totalorder %s24, 0
      %p92 = por %p90, %p91
      %p93 = scmp.ne.s32.totalorder %s81, %s82
      %p94 = scmp.eq.s32.totalorder %s25, 1
      %p95 = por %p93, %p94
      %p97 = scmp.ne.s32.totalorder %s82, %s96
      %p98 = scmp.eq.s32.totalorder %s25, 0
      %p99 = por %p97, %p98
      %s101 = sadd.s32 %s100, 1
      %p104 = scmp.eq.s32.totalorder %s19, 1
      %p105 = scmp.ne.s32.totalorder %s100, %s102
      %p106 = scmp.eq.s32.totalorder %s19, 0
      %p107 = por %p105, %p106
      %p108 = scmp.ne.s32.totalorder %s100, %s102
      %p109 = scmp.eq.s32.totalorder %s24, 1
      %p110 = por %p108, %p109
      %p111 = scmp.ne.s32.totalorder %s102, %s103
      %p112 = scmp.eq.s32.totalorder %s24, 0
      %p113 = por %p111, %p112
      %p114 = scmp.ne.s32.totalorder %s102, %s103
      %p115 = scmp.eq.s32.totalorder %s25, 1
      %p116 = por %p114, %p115
      %p118 = scmp.ne.s32.totalorder %s103, %s117
      %p119 = scmp.eq.s32.totalorder %s25, 0
      %p120 = por %p118, %p119
      %s122 = sadd.s32 %s121, 1
      %p125 = scmp.eq.s32.totalorder %s19, 1
      %p126 = scmp.ne.s32.totalorder %s121, %s123
      %p127 = scmp.eq.s32.totalorder %s19, 0
      %p128 = por %p126, %p127
      %p129 = scmp.ne.s32.totalorder %s121, %s123
      %p130 = scmp.eq.s32.totalorder %s24, 1
      %p131 = por %p129, %p130
      %p132 = scmp.ne.s32.totalorder %s123, %s124
      %p133 = scmp.eq.s32.totalorder %s24, 0
      %p134 = por %p132, %p133
      %p135 = scmp.ne.s32.totalorder %s123, %s124
      %p136 = scmp.eq.s32.totalorder %s25, 1
      %p137 = por %p135, %p136
      %p139 = scmp.ne.s32.totalorder %s124, %s138
      %p140 = scmp.eq.s32.totalorder %s25, 0
      %p141 = por %p139, %p140
      %s143 = sadd.s32 %s142, 1
      %p146 = scmp.eq.s32.totalorder %s19, 1
      %p147 = scmp.ne.s32.totalorder %s142, %s144
      %p148 = scmp.eq.s32.totalorder %s19, 0
      %p149 = por %p147, %p148
      %p150 = scmp.ne.s32.totalorder %s142, %s144
      %p151 = scmp.eq.s32.totalorder %s24, 1
      %p152 = por %p150, %p151
      %p153 = scmp.ne.s32.totalorder %s144, %s145
      %p154 = scmp.eq.s32.totalorder %s24, 0
      %p155 = por %p153, %p154
      %p156 = scmp.ne.s32.totalorder %s144, %s145
      %p157 = scmp.eq.s32.totalorder %s25, 1
      %p158 = por %p156, %p157
      %p160 = scmp.ne.s32.totalorder %s145, %s159
      %p161 = scmp.eq.s32.totalorder %s25, 0
      %p162 = por %p160, %p161
      %s164 = sadd.s32 %s163, 1
      %p167 = scmp.eq.s32.totalorder %s19, 1
      %p168 = scmp.ne.s32.totalorder %s163, %s165
      %p169 = scmp.eq.s32.totalorder %s19, 0
      %p170 = por %p168, %p169
      %p171 = scmp.ne.s32.totalorder %s163, %s165
      %p172 = scmp.eq.s32.totalorder %s24, 1
      %p173 = por %p171, %p172
      %p174 = scmp.ne.s32.totalorder %s165, %s166
      %p175 = scmp.eq.s32.totalorder %s24, 0
      %p176 = por %p174, %p175
      %p177 = scmp.ne.s32.totalorder %s165, %s166
      %p178 = scmp.eq.s32.totalorder %s25, 1
      %p179 = por %p177, %p178
      %p181 = scmp.ne.s32.totalorder %s166, %s180
      %p182 = scmp.eq.s32.totalorder %s25, 0
      %p183 = por %p181, %p182
      %s185 = sadd.s32 %s184, 1
      %p188 = scmp.eq.s32.totalorder %s19, 1
      %p189 = scmp.ne.s32.totalorder %s184, %s186
      %p190 = scmp.eq.s32.totalorder %s19, 0
      %p191 = por %p189, %p190
      %p192 = scmp.ne.s32.totalorder %s184, %s186
      %p193 = scmp.eq.s32.totalorder %s24, 1
      %p194 = por %p192, %p193
      %p195 = scmp.ne.s32.totalorder %s186, %s187
      %p196 = scmp.eq.s32.totalorder %s24, 0
      %p197 = por %p195, %p196
      %p198 = scmp.ne.s32.totalorder %s186, %s187
      %p199 = scmp.eq.s32.totalorder %s25, 1
      %p200 = por %p198, %p199
      %p202 = scmp.ne.s32.totalorder %s187, %s201
      %p203 = scmp.eq.s32.totalorder %s25, 0
      %p204 = por %p202, %p203
      %s206 = sadd.s32 %s205, 1
      %p209 = scmp.eq.s32.totalorder %s19, 1
      %p210 = scmp.ne.s32.totalorder %s205, %s207
      %p211 = scmp.eq.s32.totalorder %s19, 0
      %p212 = por %p210, %p211
      %p213 = scmp.ne.s32.totalorder %s205, %s207
      %p214 = scmp.eq.s32.totalorder %s24, 1
      %p215 = por %p213, %p214
      %p216 = scmp.ne.s32.totalorder %s207, %s208
      %p217 = scmp.eq.s32.totalorder %s24, 0
      %p218 = por %p216, %p217
      %p219 = scmp.ne.s32.totalorder %s207, %s208
      %p220 = scmp.eq.s32.totalorder %s25, 1
      %p221 = por %p219, %p220
      %p223 = scmp.ne.s32.totalorder %s208, %s222
      %p224 = scmp.eq.s32.totalorder %s25, 0
      %p225 = por %p223, %p224
      %s227 = sadd.s32 %s226, 1
      %p230 = scmp.eq.s32.totalorder %s19, 1
      %p231 = scmp.ne.s32.totalorder %s226, %s228
      %p232 = scmp.eq.s32.totalorder %s19, 0
      %p233 = por %p231, %p232
      %p234 = scmp.ne.s32.totalorder %s226, %s228
      %p235 = scmp.eq.s32.totalorder %s24, 1
      %p236 = por %p234, %p235
      %p237 = scmp.ne.s32.totalorder %s228, %s229
      %p238 = scmp.eq.s32.totalorder %s24, 0
      %p239 = por %p237, %p238
      %p240 = scmp.ne.s32.totalorder %s228, %s229
      %p241 = scmp.eq.s32.totalorder %s25, 1
      %p242 = por %p240, %p241
      %p244 = scmp.ne.s32.totalorder %s229, %s243
      %p245 = scmp.eq.s32.totalorder %s25, 0
      %p246 = por %p244, %p245
      %s247 = ssub.s32 %s19, %s26
      %p248 = scmp.eq.s32.totalorder %s247, 0
      %s250 = sadd.s32 %s249, 1
      %s251 = scalar_select %p248, %s249, %s250
      %p254 = pneg %p248
      %p255 = scmp.eq.s32.totalorder %s19, 1
      %p256 = por %p254, %p255
      %p257 = scmp.ne.s32.totalorder %s249, %s252
      %p258 = scmp.eq.s32.totalorder %s19, 0
      %p259 = por %p257, %p258
      %p260 = scmp.ne.s32.totalorder %s249, %s252
      %p261 = scmp.eq.s32.totalorder %s24, 1
      %p262 = por %p260, %p261
      %p263 = scmp.ne.s32.totalorder %s252, %s253
      %p264 = scmp.eq.s32.totalorder %s24, 0
      %p265 = por %p263, %p264
      %p266 = scmp.ne.s32.totalorder %s252, %s253
      %p267 = scmp.eq.s32.totalorder %s25, 1
      %p268 = por %p266, %p267
      %p270 = scmp.ne.s32.totalorder %s253, %s269
      %p271 = scmp.eq.s32.totalorder %s25, 0
      %p272 = por %p270, %p271
      %p273 = scmp.le.s32.totalorder 1, %s19
      %p274 = scmp.lt.s32.totalorder %s19, 3
      %p275 = pnand %p273, %p274
      %p276 = pneg %p275
      // Predicated region
      $region9: #{tpu_custom_call.1} parent=5 // pred_check
        _
      $region10: #{tpu_custom_call.1} parent=5 // pred_check_branch
        %278 = sbr.rel (%p275) target = $region12
      $region11: #{tpu_custom_call.1} parent=5 // pred_region
        %s279 = ssub.s32 %s19, 1
        // Predicated region
        $region13: #{tpu_custom_call.1} parent=11 // pred_check
          %p280 = pneg %p92
        $region14: #{tpu_custom_call.1} parent=11 // pred_check_branch
          %282 = sbr.rel (%p280) target = $region16
        $region15: #{tpu_custom_call.1} parent=11 // pred_region
          %s284 = ssub.s32 1024, 1024
          %285 = vsyncadd [#allocation4], %s284
          %s286 = sshll.u32 [#allocation3], 4
          %s287 = int_to_ptr.vmem [resolvable:$true] %s286
          %292 = dma.hbm_to_vmem [thread:$0]  %s2, 1024, %s287, [#allocation4], 64, 64, 4
        $region16: #{tpu_custom_call.1} parent=11 // pred_fallthru
          _
        // Predicated region
        $region17: #{tpu_custom_call.1} parent=11 // pred_check
          %p293 = pneg %p113
        $region18: #{tpu_custom_call.1} parent=11 // pred_check_branch
          %295 = sbr.rel (%p293) target = $region20
        $region19: #{tpu_custom_call.1} parent=11 // pred_region
          _
        $region20: #{tpu_custom_call.1} parent=11 // pred_fallthru
          _
        // Predicated region
        $region21: #{tpu_custom_call.1} parent=11 // pred_check
          %p296 = pneg %p134
        $region22: #{tpu_custom_call.1} parent=11 // pred_check_branch
          %298 = sbr.rel (%p296) target = $region24
        $region23: #{tpu_custom_call.1} parent=11 // pred_region
          %s300 = ssub.s32 2048, 2048
          %301 = vsyncadd [#allocation6], %s300
          %s302 = sshll.u32 [#allocation5], 4
          %s303 = int_to_ptr.vmem [resolvable:$true] %s302
          %308 = dma.hbm_to_vmem [thread:$0]  %s4, 2048, %s303, [#allocation6], 128, 128, 8
        $region24: #{tpu_custom_call.1} parent=11 // pred_fallthru
          _
        // Predicated region
        $region25: #{tpu_custom_call.1} parent=11 // pred_check
          %p309 = pneg %p155
        $region26: #{tpu_custom_call.1} parent=11 // pred_check_branch
          %311 = sbr.rel (%p309) target = $region28
        $region27: #{tpu_custom_call.1} parent=11 // pred_region
          _
        $region28: #{tpu_custom_call.1} parent=11 // pred_fallthru
          _
        // Predicated region
        $region29: #{tpu_custom_call.1} parent=11 // pred_check
          %p312 = pneg %p176
        $region30: #{tpu_custom_call.1} parent=11 // pred_check_branch
          %314 = sbr.rel (%p312) target = $region32
        $region31: #{tpu_custom_call.1} parent=11 // pred_region
          %s316 = ssub.s32 2048, 2048
          %317 = vsyncadd [#allocation6], %s316
          %s318 = sshll.u32 [#allocation7], 4
          %s319 = int_to_ptr.vmem [resolvable:$true] %s318
          %324 = dma.hbm_to_vmem [thread:$0]  %s6, 2048, %s319, [#allocation6], 64, 64, 4
        $region32: #{tpu_custom_call.1} parent=11 // pred_fallthru
          _
        // Predicated region
        $region33: #{tpu_custom_call.1} parent=11 // pred_check
          %p325 = pneg %p197
        $region34: #{tpu_custom_call.1} parent=11 // pred_check_branch
          %327 = sbr.rel (%p325) target = $region36
        $region35: #{tpu_custom_call.1} parent=11 // pred_region
          _
        $region36: #{tpu_custom_call.1} parent=11 // pred_fallthru
          _
        // Predicated region
        $region37: #{tpu_custom_call.1} parent=11 // pred_check
          %p328 = pneg %p218
        $region38: #{tpu_custom_call.1} parent=11 // pred_check_branch
          %330 = sbr.rel (%p328) target = $region40
        $region39: #{tpu_custom_call.1} parent=11 // pred_region
          _
        $region40: #{tpu_custom_call.1} parent=11 // pred_fallthru
          _
        // Predicated region
        $region41: #{tpu_custom_call.1} parent=11 // pred_check
          %p331 = pneg %p239
        $region42: #{tpu_custom_call.1} parent=11 // pred_check_branch
          %333 = sbr.rel (%p331) target = $region44
        $region43: #{tpu_custom_call.1} parent=11 // pred_region
          _
        $region44: #{tpu_custom_call.1} parent=11 // pred_fallthru
          _
      $region12: #{tpu_custom_call.1} parent=5 // pred_fallthru
        _
      %p334 = scmp.lt.s32.totalorder %s19, 2
      // Predicated region
      $region45: #{tpu_custom_call.1} parent=5 // pred_check
        %p335 = pneg %p334
      $region46: #{tpu_custom_call.1} parent=5 // pred_check_branch
        %337 = sbr.rel (%p335) target = $region48
      $region47: #{tpu_custom_call.1} parent=5 // pred_region
        // Predicated region
        $region49: #{tpu_custom_call.1} parent=47 // pred_check
          %p338 = pneg %p39
        $region50: #{tpu_custom_call.1} parent=47 // pred_check_branch
          %340 = sbr.rel (%p338) target = $region52
        $region51: #{tpu_custom_call.1} parent=47 // pred_region
          %p341 = scmp.lt.s32.totalorder %s19, 1
          %s342 = scalar_select %p341, %s19, 1
          %s343 = smul.addr %s342, 8
          %s344 = scalar_lea.vmem %s0, %s343
        $region52: #{tpu_custom_call.1} parent=47 // pred_fallthru
          _
        // Predicated region
        $region53: #{tpu_custom_call.1} parent=47 // pred_check
          %p345 = pneg %p65
        $region54: #{tpu_custom_call.1} parent=47 // pred_check_branch
          %347 = sbr.rel (%p345) target = $region56
        $region55: #{tpu_custom_call.1} parent=47 // pred_region
          %p348 = scmp.lt.s32.totalorder %s19, 1
          %s349 = scalar_select %p348, %s19, 1
          %s350 = smul.addr %s349, 8
          %s351 = scalar_lea.vmem %s1, %s350
        $region56: #{tpu_custom_call.1} parent=47 // pred_fallthru
          _
      $region48: #{tpu_custom_call.1} parent=5 // pred_fallthru
        _
      %p352 = scmp.le.s32.totalorder 1, %s19
      %p353 = scmp.lt.s32.totalorder %s19, 3
      %p354 = pnand %p352, %p353
      %p355 = pneg %p354
      // Predicated region
      $region57: #{tpu_custom_call.1} parent=5 // pred_check
        _
      $region58: #{tpu_custom_call.1} parent=5 // pred_check_branch
        %357 = sbr.rel (%p354) target = $region60
      $region59: #{tpu_custom_call.1} parent=5 // pred_region
        %s358 = ssub.s32 %s19, 1
        // Predicated region
        $region61: #{tpu_custom_call.1} parent=59 // pred_check
          %p359 = pneg %p92
        $region62: #{tpu_custom_call.1} parent=59 // pred_check_branch
          %361 = sbr.rel (%p359) target = $region64
        $region63: #{tpu_custom_call.1} parent=59 // pred_region
          %362 = dma.done [#allocation4], 1024
        $region64: #{tpu_custom_call.1} parent=59 // pred_fallthru
          _
        // Predicated region
        $region65: #{tpu_custom_call.1} parent=59 // pred_check
          %p363 = pneg %p134
        $region66: #{tpu_custom_call.1} parent=59 // pred_check_branch
          %365 = sbr.rel (%p363) target = $region68
        $region67: #{tpu_custom_call.1} parent=59 // pred_region
          %366 = dma.done [#allocation6], 2048
        $region68: #{tpu_custom_call.1} parent=59 // pred_fallthru
          _
        // Predicated region
        $region69: #{tpu_custom_call.1} parent=59 // pred_check
          %p367 = pneg %p176
        $region70: #{tpu_custom_call.1} parent=59 // pred_check_branch
          %369 = sbr.rel (%p367) target = $region72
        $region71: #{tpu_custom_call.1} parent=59 // pred_region
          %370 = dma.done [#allocation6], 2048
        $region72: #{tpu_custom_call.1} parent=59 // pred_fallthru
          _
        %p371 = scmp.lt.s32.totalorder %s24, 1
        %s372 = scalar_select %p371, %s24, 1
        %s373 = smul.addr %s372, 8
        %s374 = scalar_lea.vmem %s0, %s373
        %p375 = pneg %p45
        %p376 = pneg %p42
        %p377 = scmp.lt.s32.totalorder %s24, 1
        %s378 = scalar_select %p377, %s24, 1
        %s379 = smul.addr %s378, 8
        %s380 = scalar_lea.vmem %s1, %s379
        %p381 = pneg %p71
        %p382 = pneg %p68
        %p383 = pneg %p92
        %p384 = pneg %p89
        %p385 = pneg %p113
        %p386 = pneg %p110
        %p387 = pneg %p134
        %p388 = pneg %p131
        %p389 = pneg %p155
        %p390 = pneg %p152
        %p391 = pneg %p176
        %p392 = pneg %p173
        %p393 = pneg %p197
        %p394 = pneg %p194
        %p395 = pneg %p218
        %p396 = pneg %p215
        %p397 = pneg %p239
        %p398 = pneg %p236
        %p399 = pneg %p265
        %p400 = pneg %p262
        %p401 = scmp.lt.s32.totalorder %s24, 1
        %s402 = scalar_select %p401, %s24, 1
        %s403 = smul.addr %s402, 8
        %s404 = scalar_lea.vmem %s10, %s403
        %p405 = scmp.lt.s32.totalorder %s24, 1
        %s406 = scalar_select %p405, %s24, 1
        %s407 = smul.addr %s406, 8
        %s408 = scalar_lea.vmem %s0, %s407
        %p409 = scmp.lt.s32.totalorder %s24, 1
        %s410 = scalar_select %p409, %s24, 1
        %s411 = smul.addr %s410, 8
        %s412 = scalar_lea.vmem %s1, %s411
        %p413 = scmp.lt.s32.totalorder %s24, 1
        %s414 = scalar_select %p413, %s24, 1
        %s415 = smul.addr %s414, 8
        %s416 = scalar_lea.vmem %s10, %s415
        %v418 = vlaneseq
        %v419 = vand.u32 %v418, 127
        %v420 = vld [vmem:[%s412] sm:$0xff]
        %421 = vset.pattern.permute.xlu0 0
        %422 = vperm.xlu0 %421, %v420
        %v423 = vpop.permute.xlu0 %422
        %vm424 = vcmp.eq.s32.totalorder %v419, %v423
        %425 = vset.pattern.permute.xlu0 1
        %426 = vperm.xlu0 %425, %v420
        %v427 = vpop.permute.xlu0 %426
        %vm428 = vcmp.eq.s32.totalorder %v419, %v427
        %vm429 = vmor %vm424, %vm428
        %430 = vset.pattern.permute.xlu0 2
        %431 = vperm.xlu0 %430, %v420
        %v432 = vpop.permute.xlu0 %431
        %vm433 = vcmp.eq.s32.totalorder %v419, %v432
        %vm434 = vmor %vm429, %vm433
        %v435 = vsel %vm434, 1, 0
        %v436 = vcvt.s32.f32 %v435
        %v437 = vld [vmem:[%s408] sm:$0xff]
        %vm438 = vcmp.eq.s32.totalorder %v419, 0
        %440 = vset.pattern.permute.xlu0 0
        %441 = vperm.xlu0 %440, %v437
        %v442 = vpop.permute.xlu0 %441
        %v444 = vsel %vm438, %v442, %v436
        %vm445 = vcmp.eq.s32.totalorder %v419, 1
        %446 = vset.pattern.permute.xlu0 1
        %447 = vperm.xlu0 %446, %v437
        %v448 = vpop.permute.xlu0 %447
        %v450 = vsel %vm445, %v448, %v444
        %vm451 = vcmp.eq.s32.totalorder %v419, 2
        %452 = vset.pattern.permute.xlu0 2
        %453 = vperm.xlu0 %452, %v437
        %v454 = vpop.permute.xlu0 %453
        %v456 = vsel %vm451, %v454, %v450
        %vm457 = vcmp.eq.s32.totalorder %v419, 3
        %458 = vset.pattern.permute.xlu0 3
        %459 = vperm.xlu0 %458, %v437
        %v460 = vpop.permute.xlu0 %459
        %v462 = vsel %vm457, %v460, %v456
        %vm463 = vcmp.eq.s32.totalorder %v419, 4
        %464 = vset.pattern.permute.xlu0 4
        %465 = vperm.xlu0 %464, %v437
        %v466 = vpop.permute.xlu0 %465
        %v468 = vsel %vm463, %v466, %v462
        %v469 = vpack.c.bf16 %v468, %v468
        %v470 = vld [vmem:[#allocation3] sm:$0xf]
        %v471 = vld [vmem:[#allocation3 + $0x4] sm:$0xf]
        %v472 = vld [vmem:[#allocation3 + $0x8] sm:$0xf]
        %v473 = vld [vmem:[#allocation3 + $0xc] sm:$0xf]
        %v474 = vld [vmem:[#allocation3 + $0x10] sm:$0xf]
        %v475 = vld [vmem:[#allocation3 + $0x14] sm:$0xf]
        %v476 = vld [vmem:[#allocation3 + $0x18] sm:$0xf]
        %v477 = vld [vmem:[#allocation3 + $0x1c] sm:$0xf]
        %v478 = vld [vmem:[#allocation3 + $0x20] sm:$0xf]
        %v479 = vld [vmem:[#allocation3 + $0x24] sm:$0xf]
        %v480 = vld [vmem:[#allocation3 + $0x28] sm:$0xf]
        %v481 = vld [vmem:[#allocation3 + $0x2c] sm:$0xf]
        %v482 = vld [vmem:[#allocation3 + $0x30] sm:$0xf]
        %v483 = vld [vmem:[#allocation3 + $0x34] sm:$0xf]
        %v484 = vld [vmem:[#allocation3 + $0x38] sm:$0xf]
        %v485 = vld [vmem:[#allocation3 + $0x3c] sm:$0xf]
        %v486 = vld [vmem:[%s3] sm:$0x1]
        %v488 = vlaneseq
        %v489 = vshrl.u32 %v488, 7
        %v490 = vsub.s32 0, %v489
        %v491 = vrot.slane %v486, %v490
        %v509 = vunpack.c.l.b16 %v470
        %v510 = vunpack.c.l.b16 %v471
        %v511 = vunpack.c.l.b16 %v472
        %v512 = vunpack.c.l.b16 %v473
        %v513 = vunpack.c.l.b16 %v474
        %v514 = vunpack.c.l.b16 %v475
        %v515 = vunpack.c.l.b16 %v476
        %v516 = vunpack.c.l.b16 %v477
        %v517 = vunpack.c.l.b16 %v478
        %v518 = vunpack.c.l.b16 %v479
        %v519 = vunpack.c.l.b16 %v480
        %v520 = vunpack.c.l.b16 %v481
        %v521 = vunpack.c.l.b16 %v482
        %v522 = vunpack.c.l.b16 %v483
        %v523 = vunpack.c.l.b16 %v484
        %v524 = vunpack.c.l.b16 %v485
        %v525 = vpack.c.b16 %v510, %v509
        %v526 = vpack.c.b16 %v512, %v511
        %v527 = vpack.c.b16 %v514, %v513
        %v528 = vpack.c.b16 %v516, %v515
        %v529 = vpack.c.b16 %v518, %v517
        %v530 = vpack.c.b16 %v520, %v519
        %v531 = vpack.c.b16 %v522, %v521
        %v532 = vpack.c.b16 %v524, %v523
        %541 = vmatprep.subr.bf16.mxu0 0
        %542 = vmatpush1.bf16.msra.mxu0 %v525
        %543 = vmatprep.subr.bf16.mxu0 0
        %544 = vmatpush1.bf16.msra.mxu0 %v526
        %545 = vmatprep.subr.bf16.mxu0 0
        %546 = vmatpush1.bf16.msra.mxu0 %v527
        %547 = vmatprep.subr.bf16.mxu0 0
        %548 = vmatpush1.bf16.msra.mxu0 %v528
        %549 = vmatprep.subr.bf16.mxu0 0
        %550 = vmatpush1.bf16.msra.mxu0 %v529
        %551 = vmatprep.subr.bf16.mxu0 0
        %552 = vmatpush1.bf16.msra.mxu0 %v530
        %553 = vmatprep.subr.bf16.mxu0 0
        %554 = vmatpush1.bf16.msra.mxu0 %v531
        %555 = vmatprep.subr.bf16.mxu0 0
        %556 = vmatpush1.bf16.msra.mxu0 %v532
        %557 = vmatprep.subr.bf16.mxu0 0
        %558 = vmatpush1.bf16.msra.mxu0 0
        %559 = vmatprep.subr.bf16.mxu0 0
        %560 = vmatpush1.bf16.msra.mxu0 0
        %561 = vmatprep.subr.bf16.mxu0 0
        %562 = vmatpush1.bf16.msra.mxu0 0
        %563 = vmatprep.subr.bf16.mxu0 0
        %564 = vmatpush1.bf16.msra.mxu0 0
        %565 = vmatprep.subr.bf16.mxu0 0
        %566 = vmatpush1.bf16.msra.mxu0 0
        %567 = vmatprep.subr.bf16.mxu0 0
        %568 = vmatpush1.bf16.msra.mxu0 0
        %569 = vmatprep.subr.bf16.mxu0 0
        %570 = vmatpush1.bf16.msra.mxu0 0
        %571 = vmatprep.subr.bf16.mxu0 0
        %572 = vmatpush1.bf16.msra.mxu0 0
        %573 = vmatprep.mubr.bf16.mxu0 0
        %574 = vmatmul.mubr.bf16.gmra.mrb[0].mxu0 %v469
        %v575 = vpop.f32.mrb[0].mxu0
        %v576 = vadd.f32 %v491, %v575
        %v577 = vpop.f32.mrb[0].mxu0
        %v578 = vpop.f32.mrb[0].mxu0
        %v579 = vpop.f32.mrb[0].mxu0
        %580 = vdwg.mxu0
        %v581 = vmax.f32 %v576, 0.0
        %v582 = vpack.c.bf16 %v581, %v581
        %v583 = vld [vmem:[#allocation5] sm:$0xff]
        %v584 = vld [vmem:[#allocation5 + $0x8] sm:$0xff]
        %v585 = vld [vmem:[#allocation5 + $0x10] sm:$0xff]
        %v586 = vld [vmem:[#allocation5 + $0x18] sm:$0xff]
        %v587 = vld [vmem:[#allocation5 + $0x20] sm:$0xff]
        %v588 = vld [vmem:[#allocation5 + $0x28] sm:$0xff]
        %v589 = vld [vmem:[#allocation5 + $0x30] sm:$0xff]
        %v590 = vld [vmem:[#allocation5 + $0x38] sm:$0xff]
        %v591 = vld [vmem:[#allocation5 + $0x40] sm:$0xff]
        %v592 = vld [vmem:[#allocation5 + $0x48] sm:$0xff]
        %v593 = vld [vmem:[#allocation5 + $0x50] sm:$0xff]
        %v594 = vld [vmem:[#allocation5 + $0x58] sm:$0xff]
        %v595 = vld [vmem:[#allocation5 + $0x60] sm:$0xff]
        %v596 = vld [vmem:[#allocation5 + $0x68] sm:$0xff]
        %v597 = vld [vmem:[#allocation5 + $0x70] sm:$0xff]
        %v598 = vld [vmem:[#allocation5 + $0x78] sm:$0xff]
        %v599 = vld [vmem:[%s5] sm:$0x3]
        %v601 = vlaneseq
        %v602 = vshrl.u32 %v601, 7
        %v603 = vsub.s32 0, %v602
        %v604 = vrot.slane %v599, %v603
        %v605 = vlaneseq
        %v606 = vshrl.u32 %v605, 7
        %v607 = vsub.s32 1, %v606
        %v608 = vrot.slane %v599, %v607
        %v627 = vunpack.c.l.b16 %v583
        %v628 = vunpack.c.h.b16 %v583
        %v629 = vunpack.c.l.b16 %v584
        %v630 = vunpack.c.h.b16 %v584
        %v631 = vunpack.c.l.b16 %v585
        %v632 = vunpack.c.h.b16 %v585
        %v633 = vunpack.c.l.b16 %v586
        %v634 = vunpack.c.h.b16 %v586
        %v635 = vunpack.c.l.b16 %v587
        %v636 = vunpack.c.h.b16 %v587
        %v637 = vunpack.c.l.b16 %v588
        %v638 = vunpack.c.h.b16 %v588
        %v639 = vunpack.c.l.b16 %v589
        %v640 = vunpack.c.h.b16 %v589
        %v641 = vunpack.c.l.b16 %v590
        %v642 = vunpack.c.h.b16 %v590
        %v643 = vunpack.c.l.b16 %v591
        %v644 = vunpack.c.h.b16 %v591
        %v645 = vunpack.c.l.b16 %v592
        %v646 = vunpack.c.h.b16 %v592
        %v647 = vunpack.c.l.b16 %v593
        %v648 = vunpack.c.h.b16 %v593
        %v649 = vunpack.c.l.b16 %v594
        %v650 = vunpack.c.h.b16 %v594
        %v651 = vunpack.c.l.b16 %v595
        %v652 = vunpack.c.h.b16 %v595
        %v653 = vunpack.c.l.b16 %v596
        %v654 = vunpack.c.h.b16 %v596
        %v655 = vunpack.c.l.b16 %v597
        %v656 = vunpack.c.h.b16 %v597
        %v657 = vunpack.c.l.b16 %v598
        %v658 = vunpack.c.h.b16 %v598
        %v659 = vpack.c.b16 %v629, %v627
        %v660 = vpack.c.b16 %v630, %v628
        %v661 = vpack.c.b16 %v633, %v631
        %v662 = vpack.c.b16 %v634, %v632
        %v663 = vpack.c.b16 %v637, %v635
        %v664 = vpack.c.b16 %v638, %v636
        %v665 = vpack.c.b16 %v641, %v639
        %v666 = vpack.c.b16 %v642, %v640
        %v667 = vpack.c.b16 %v645, %v643
        %v668 = vpack.c.b16 %v646, %v644
        %v669 = vpack.c.b16 %v649, %v647
        %v670 = vpack.c.b16 %v650, %v648
        %v671 = vpack.c.b16 %v653, %v651
        %v672 = vpack.c.b16 %v654, %v652
        %v673 = vpack.c.b16 %v657, %v655
        %v674 = vpack.c.b16 %v658, %v656
        %691 = vmatprep.subr.bf16.mxu0 %v660
        %692 = vmatpush1.bf16.msra.mxu0 %v659
        %693 = vmatprep.subr.bf16.mxu0 %v662
        %694 = vmatpush1.bf16.msra.mxu0 %v661
        %695 = vmatprep.subr.bf16.mxu0 %v664
        %696 = vmatpush1.bf16.msra.mxu0 %v663
        %697 = vmatprep.subr.bf16.mxu0 %v666
        %698 = vmatpush1.bf16.msra.mxu0 %v665
        %699 = vmatprep.subr.bf16.mxu0 %v668
        %700 = vmatpush1.bf16.msra.mxu0 %v667
        %701 = vmatprep.subr.bf16.mxu0 %v670
        %702 = vmatpush1.bf16.msra.mxu0 %v669
        %703 = vmatprep.subr.bf16.mxu0 %v672
        %704 = vmatpush1.bf16.msra.mxu0 %v671
        %705 = vmatprep.subr.bf16.mxu0 %v674
        %706 = vmatpush1.bf16.msra.mxu0 %v673
        %707 = vmatprep.subr.bf16.mxu0 0
        %708 = vmatpush1.bf16.msra.mxu0 0
        %709 = vmatprep.subr.bf16.mxu0 0
        %710 = vmatpush1.bf16.msra.mxu0 0
        %711 = vmatprep.subr.bf16.mxu0 0
        %712 = vmatpush1.bf16.msra.mxu0 0
        %713 = vmatprep.subr.bf16.mxu0 0
        %714 = vmatpush1.bf16.msra.mxu0 0
        %715 = vmatprep.subr.bf16.mxu0 0
        %716 = vmatpush1.bf16.msra.mxu0 0
        %717 = vmatprep.subr.bf16.mxu0 0
        %718 = vmatpush1.bf16.msra.mxu0 0
        %719 = vmatprep.subr.bf16.mxu0 0
        %720 = vmatpush1.bf16.msra.mxu0 0
        %721 = vmatprep.subr.bf16.mxu0 0
        %722 = vmatpush1.bf16.msra.mxu0 0
        %723 = vmatprep.mubr.bf16.mxu0 0
        %724 = vmatmul.mubr.bf16.gmra.mrb[0].mxu0 %v582
        %v725 = vpop.f32.mrb[0].mxu0
        %v726 = vadd.f32 %v604, %v725
        %v727 = vpop.f32.mrb[0].mxu0
        %v728 = vadd.f32 %v608, %v727
        %v729 = vpop.f32.mrb[0].mxu0
        %v730 = vpop.f32.mrb[0].mxu0
        %731 = vdwg.mxu0
        %v732 = vmax.f32 %v726, 0.0
        %v733 = vmax.f32 %v728, 0.0
        %v734 = vpack.c.bf16 %v732, %v732
        %v735 = vpack.c.bf16 %v733, %v733
        %v736 = vld [vmem:[#allocation7] sm:$0xf]
        %v737 = vld [vmem:[#allocation7 + $0x4] sm:$0xf]
        %v738 = vld [vmem:[#allocation7 + $0x8] sm:$0xf]
        %v739 = vld [vmem:[#allocation7 + $0xc] sm:$0xf]
        %v740 = vld [vmem:[#allocation7 + $0x10] sm:$0xf]
        %v741 = vld [vmem:[#allocation7 + $0x14] sm:$0xf]
        %v742 = vld [vmem:[#allocation7 + $0x18] sm:$0xf]
        %v743 = vld [vmem:[#allocation7 + $0x1c] sm:$0xf]
        %v744 = vld [vmem:[#allocation7 + $0x20] sm:$0xf]
        %v745 = vld [vmem:[#allocation7 + $0x24] sm:$0xf]
        %v746 = vld [vmem:[#allocation7 + $0x28] sm:$0xf]
        %v747 = vld [vmem:[#allocation7 + $0x2c] sm:$0xf]
        %v748 = vld [vmem:[#allocation7 + $0x30] sm:$0xf]
        %v749 = vld [vmem:[#allocation7 + $0x34] sm:$0xf]
        %v750 = vld [vmem:[#allocation7 + $0x38] sm:$0xf]
        %v751 = vld [vmem:[#allocation7 + $0x3c] sm:$0xf]
        %v752 = vld [vmem:[#allocation7 + $0x40] sm:$0xf]
        %v753 = vld [vmem:[#allocation7 + $0x44] sm:$0xf]
        %v754 = vld [vmem:[#allocation7 + $0x48] sm:$0xf]
        %v755 = vld [vmem:[#allocation7 + $0x4c] sm:$0xf]
        %v756 = vld [vmem:[#allocation7 + $0x50] sm:$0xf]
        %v757 = vld [vmem:[#allocation7 + $0x54] sm:$0xf]
        %v758 = vld [vmem:[#allocation7 + $0x58] sm:$0xf]
        %v759 = vld [vmem:[#allocation7 + $0x5c] sm:$0xf]
        %v760 = vld [vmem:[#allocation7 + $0x60] sm:$0xf]
        %v761 = vld [vmem:[#allocation7 + $0x64] sm:$0xf]
        %v762 = vld [vmem:[#allocation7 + $0x68] sm:$0xf]
        %v763 = vld [vmem:[#allocation7 + $0x6c] sm:$0xf]
        %v764 = vld [vmem:[#allocation7 + $0x70] sm:$0xf]
        %v765 = vld [vmem:[#allocation7 + $0x74] sm:$0xf]
        %v766 = vld [vmem:[#allocation7 + $0x78] sm:$0xf]
        %v767 = vld [vmem:[#allocation7 + $0x7c] sm:$0xf]
        %v768 = vld [vmem:[%s7] sm:$0x1]
        %v770 = vlaneseq
        %v771 = vshrl.u32 %v770, 7
        %v772 = vsub.s32 0, %v771
        %v773 = vrot.slane %v768, %v772
        %v807 = vunpack.c.l.b16 %v736
        %v808 = vunpack.c.l.b16 %v737
        %v809 = vunpack.c.l.b16 %v738
        %v810 = vunpack.c.l.b16 %v739
        %v811 = vunpack.c.l.b16 %v740
        %v812 = vunpack.c.l.b16 %v741
        %v813 = vunpack.c.l.b16 %v742
        %v814 = vunpack.c.l.b16 %v743
        %v815 = vunpack.c.l.b16 %v744
        %v816 = vunpack.c.l.b16 %v745
        %v817 = vunpack.c.l.b16 %v746
        %v818 = vunpack.c.l.b16 %v747
        %v819 = vunpack.c.l.b16 %v748
        %v820 = vunpack.c.l.b16 %v749
        %v821 = vunpack.c.l.b16 %v750
        %v822 = vunpack.c.l.b16 %v751
        %v823 = vunpack.c.l.b16 %v752
        %v824 = vunpack.c.l.b16 %v753
        %v825 = vunpack.c.l.b16 %v754
        %v826 = vunpack.c.l.b16 %v755
        %v827 = vunpack.c.l.b16 %v756
        %v828 = vunpack.c.l.b16 %v757
        %v829 = vunpack.c.l.b16 %v758
        %v830 = vunpack.c.l.b16 %v759
        %v831 = vunpack.c.l.b16 %v760
        %v832 = vunpack.c.l.b16 %v761
        %v833 = vunpack.c.l.b16 %v762
        %v834 = vunpack.c.l.b16 %v763
        %v835 = vunpack.c.l.b16 %v764
        %v836 = vunpack.c.l.b16 %v765
        %v837 = vunpack.c.l.b16 %v766
        %v838 = vunpack.c.l.b16 %v767
        %v839 = vpack.c.b16 %v808, %v807
        %v840 = vpack.c.b16 %v810, %v809
        %v841 = vpack.c.b16 %v812, %v811
        %v842 = vpack.c.b16 %v814, %v813
        %v843 = vpack.c.b16 %v816, %v815
        %v844 = vpack.c.b16 %v818, %v817
        %v845 = vpack.c.b16 %v820, %v819
        %v846 = vpack.c.b16 %v822, %v821
        %v847 = vpack.c.b16 %v824, %v823
        %v848 = vpack.c.b16 %v826, %v825
        %v849 = vpack.c.b16 %v828, %v827
        %v850 = vpack.c.b16 %v830, %v829
        %v851 = vpack.c.b16 %v832, %v831
        %v852 = vpack.c.b16 %v834, %v833
        %v853 = vpack.c.b16 %v836, %v835
        %v854 = vpack.c.b16 %v838, %v837
        %871 = vmatprep.subr.bf16.mxu0 0
        %872 = vmatpush1.bf16.msra.mxu0 %v839
        %873 = vmatprep.subr.bf16.mxu0 0
        %874 = vmatpush1.bf16.msra.mxu0 %v840
        %875 = vmatprep.subr.bf16.mxu0 0
        %876 = vmatpush1.bf16.msra.mxu0 %v841
        %877 = vmatprep.subr.bf16.mxu0 0
        %878 = vmatpush1.bf16.msra.mxu0 %v842
        %879 = vmatprep.subr.bf16.mxu0 0
        %880 = vmatpush1.bf16.msra.mxu0 %v843
        %881 = vmatprep.subr.bf16.mxu0 0
        %882 = vmatpush1.bf16.msra.mxu0 %v844
        %883 = vmatprep.subr.bf16.mxu0 0
        %884 = vmatpush1.bf16.msra.mxu0 %v845
        %885 = vmatprep.subr.bf16.mxu0 0
        %886 = vmatpush1.bf16.msra.mxu0 %v846
        %887 = vmatprep.subr.bf16.mxu0 0
        %888 = vmatpush1.bf16.msra.mxu0 %v847
        %889 = vmatprep.subr.bf16.mxu0 0
        %890 = vmatpush1.bf16.msra.mxu0 %v848
        %891 = vmatprep.subr.bf16.mxu0 0
        %892 = vmatpush1.bf16.msra.mxu0 %v849
        %893 = vmatprep.subr.bf16.mxu0 0
        %894 = vmatpush1.bf16.msra.mxu0 %v850
        %895 = vmatprep.subr.bf16.mxu0 0
        %896 = vmatpush1.bf16.msra.mxu0 %v851
        %897 = vmatprep.subr.bf16.mxu0 0
        %898 = vmatpush1.bf16.msra.mxu0 %v852
        %899 = vmatprep.subr.bf16.mxu0 0
        %900 = vmatpush1.bf16.msra.mxu0 %v853
        %901 = vmatprep.subr.bf16.mxu0 0
        %902 = vmatpush1.bf16.msra.mxu0 %v854
        %903 = vmatprep.mubr.bf16.mxu0 %v735
        %904 = vmatmul.mubr.bf16.gmra.mrb[0].mxu0 %v734
        %v905 = vpop.f32.mrb[0].mxu0
        %v906 = vadd.f32 %v773, %v905
        %v907 = vpop.f32.mrb[0].mxu0
        %v908 = vpop.f32.mrb[0].mxu0
        %v909 = vpop.f32.mrb[0].mxu0
        %910 = vdwg.mxu0
        %v911 = vmax.f32 %v906, 0.0
        %v912 = vld [vmem:[%s8] sm:$0x1]
        %v914 = vlaneseq
        %v915 = vshrl.u32 %v914, 7
        %v916 = vsub.s32 0, %v915
        %v917 = vrot.slane %v912, %v916
        %v919 = vmul.f32 %v911, %v917
        %920 = vadd.xlane.f32.xlu0 %v919
        %v921 = vpop.xlane.xlu0 %920
        %s922 = sld [smem:[#allocation2]]
        %v923 = vstv %s922
        %v924 = vadd.f32 %v921, %v923
        %vm925 = vcmask 7168
        %926 = vst.msk [vmem:[%s416] sm:$0xff] %vm925, %v924
        %p927 = scmp.lt.s32.totalorder %s24, 1
        %s928 = scalar_select %p927, %s24, 1
        %s929 = smul.addr %s928, 8
        %s930 = scalar_lea.vmem %s10, %s929
        // Predicated region
        $region73: #{tpu_custom_call.1} parent=59 // pred_check
          %p931 = pneg %p262
        $region74: #{tpu_custom_call.1} parent=59 // pred_check_branch
          %933 = sbr.rel (%p931) target = $region76
        $region75: #{tpu_custom_call.1} parent=59 // pred_region
          _
        $region76: #{tpu_custom_call.1} parent=59 // pred_fallthru
          _
      $region60: #{tpu_custom_call.1} parent=5 // pred_fallthru
        _
      %p934 = scmp.le.s32.totalorder 2, %s19
      // Predicated region
      $region77: #{tpu_custom_call.1} parent=5 // pred_check
        %p935 = pneg %p934
      $region78: #{tpu_custom_call.1} parent=5 // pred_check_branch
        %937 = sbr.rel (%p935) target = $region80
      $region79: #{tpu_custom_call.1} parent=5 // pred_region
        %s938 = ssub.s32 %s19, 2
        // Predicated region
        $region81: #{tpu_custom_call.1} parent=79 // pred_check
          %p939 = pneg %p268
        $region82: #{tpu_custom_call.1} parent=79 // pred_check_branch
          %941 = sbr.rel (%p939) target = $region84
        $region83: #{tpu_custom_call.1} parent=79 // pred_region
          %p942 = scmp.lt.s32.totalorder %s25, 1
          %s943 = scalar_select %p942, %s25, 1
          %s944 = smul.addr %s943, 8
          %s945 = scalar_lea.vmem %s10, %s944
        $region84: #{tpu_custom_call.1} parent=79 // pred_fallthru
          _
      $region80: #{tpu_custom_call.1} parent=5 // pred_fallthru
        _
    $region6: #{tpu_custom_call.1} parent=1 // loop_footer
      %s23 = sadd.s32 1, %s19
    $region7: #{tpu_custom_call.1} parent=1 // loop_footer_branch
      %18 = sbr.rel target = $region3
    $region8: #{tpu_custom_call.1} parent=1 // loop_exit
      _
    %946 = vsyncpa [#allocation4], 1
    %s947 = scalar_lea.sflag [#allocation4], 1
    %948 = vsyncpa %s947, 1
    %949 = vsyncpa [#allocation6], 1

</llo_original>
